<compile_context>
chip_gen: v7x
topology: tpu7x:2x2x1
jax: 0.10.0
libtpu: 0.0.40
codegen_flags: <defaults>
</compile_context>

<pallas_src>
import functools

import jax
import jax.numpy as jnp
from jax import lax
from jax.experimental import pallas as pl
from jax.experimental.pallas import tpu as pltpu


# ---------------------------------------------------------------------------
# Helpers
# ---------------------------------------------------------------------------
def _round_up(v, m):
    return (v + m - 1) // m * m


def _vmem_capacity_bytes():
    """Physical VMEM per TensorCore; conservative fallback if query fails."""
    try:
        info = pltpu.get_tpu_info()
        for attr in ("vmem_capacity_bytes", "vmem_bytes", "vmem_size_bytes"):
            v = getattr(info, attr, None)
            if v:
                return int(v)
    except Exception:
        pass
    return 64 * 1024 * 1024  # v7x per-TC size: safe lower bound everywhere


def _sublane_multiple(dtype):
    itemsize = jnp.dtype(dtype).itemsize
    return max(8, 32 // max(itemsize, 1))  # f32: 8, bf16: 16, int8/fp8: 32


def _pick_tile_n(n, c, itemsize, sublane, tile_budget_bytes):
    # Per-row VMEM bytes: pass 2 = double-buffered in + out tiles;
    # pass 1 = double-buffered in tile + transient f32 cast.  Take the max.
    per_row = max(4 * c * itemsize, 2 * c * itemsize + 4 * c)
    t = max(sublane, tile_budget_bytes // max(per_row, 1))
    t = min(int(t), 1024, _round_up(n, sublane))
    return max(sublane, (t // sublane) * sublane)


# ---------------------------------------------------------------------------
# Kernels
# ---------------------------------------------------------------------------
def _se_fused_kernel(x_ref, w1t_ref, b1_ref, w2t_ref, b2_ref, o_ref, *,
                     inv_n, compute_dtype):
    """Whole x resident in VMEM: squeeze + excitation + scale in one shot."""
    total = jnp.sum(x_ref[...].astype(jnp.float32), axis=0, keepdims=True)
    mean = total * inv_n                                                  # (1, C)
    h = jnp.dot(mean, w1t_ref[...], preferred_element_type=jnp.float32) + b1_ref[...]
    h = jnp.maximum(h, 0.0)                                               # (1, H)
    s = jnp.dot(h, w2t_ref[...], preferred_element_type=jnp.float32) + b2_ref[...]
    se = jax.nn.sigmoid(s).astype(compute_dtype)                          # (1, C)
    o_ref[...] = (x_ref[...].astype(compute_dtype) * se).astype(o_ref.dtype)


def _se_partial_sum_kernel(x_ref, part_ref, *, n_rows, tile_n, tiles_per_half,
                           needs_mask):
    """Pass 1: each (parallel) half accumulates an (8, C) f32 partial sum.

    Per step: mask ragged/phantom rows (static-flag gated), cast to f32,
    fold the (TILE_N, C) tile into 8 sublane rows with pure vreg adds.
    The cross-sublane reduce + FCs happen once in the finalize kernel.
    """
    j = pl.program_id(0)   # which half (core on v7x)
    k = pl.program_id(1)   # tile within the half (reduction axis)

    @pl.when(k == 0)
    def _init():
        part_ref[...] = jnp.zeros_like(part_ref)

    x = x_ref[...]
    if needs_mask:
        t = j * tiles_per_half + k
        row = lax.broadcasted_iota(jnp.int32, (tile_n, 1), 0)
        x = jnp.where(row < (n_rows - t * tile_n), x, jnp.zeros((), x.dtype))
    c = x.shape[-1]
    xf = x.astype(jnp.float32)
    part_ref[...] += jnp.sum(xf.reshape(tile_n // 8, 8, c), axis=0)


def _se_finalize_kernel(part_ref, w1t_ref, b1_ref, w2t_ref, b2_ref, se_ref, *,
                        inv_n):
    """Tiny: (2*8, C) partial sums -> mean -> FC1+relu -> FC2+sigmoid."""
    mean = jnp.sum(part_ref[...], axis=0, keepdims=True) * inv_n          # (1, C)
    h = jnp.dot(mean, w1t_ref[...], preferred_element_type=jnp.float32) + b1_ref[...]
    h = jnp.maximum(h, 0.0)
    s = jnp.dot(h, w2t_ref[...], preferred_element_type=jnp.float32) + b2_ref[...]
    se_ref[...] = jax.nn.sigmoid(s)


def _se_scale_kernel(x_ref, se_ref, o_ref, *, compute_dtype):
    """Pass 2: out = x * se (se block resident via constant index map)."""
    se = se_ref[...].astype(compute_dtype)
    o_ref[...] = (x_ref[...].astype(compute_dtype) * se).astype(o_ref.dtype)


# ---------------------------------------------------------------------------
# Wrapper
# ---------------------------------------------------------------------------
def squeeze_excitation(x, w1, b1, w2, b2, *, force_tiled=False, max_tile_n=None,
                       donate_x=False):
    """Pallas TPU forward of SqueezeExcitation.

    x  : (N, C)
    w1 : (H, C), b1 : (H,)   with H = C // reduction   (torch nn.Linear layout)
    w2 : (C, H), b2 : (C,)
    donate_x : alias x's HBM buffer with the output (only if caller will not
               reuse x); saves an output allocation, same DMA bytes.
    """
    n, c = x.shape
    hdim = w1.shape[0]
    assert w1.shape == (hdim, c) and w2.shape == (c, hdim)
    assert b1.shape == (hdim,) and b2.shape == (c,)

    # Tiny FC params: transpose / upcast once in the wrapper (negligible cost).
    w1t = w1.astype(jnp.float32).T                  # (C, H)
    w2t = w2.astype(jnp.float32).T                  # (H, C)
    b1r = b1.astype(jnp.float32).reshape(1, hdim)
    b2r = b2.astype(jnp.float32).reshape(1, c)
    inv_n = 1.0 / n

    itemsize = jnp.dtype(x.dtype).itemsize
    compute_dtype = (x.dtype if x.dtype in (jnp.bfloat16, jnp.float16, jnp.float32)
                     else jnp.float32)

    # Generation-aware scoped VMEM (v5e/v6e: 128 MiB -> ~96; v7x: 64 -> 48).
    vmem_budget = min(_vmem_capacity_bytes() * 3 // 4, 100 * 1024 * 1024)
    vmem_params = dict(vmem_limit_bytes=int(vmem_budget))
    io_alias = {0: 0} if donate_x else {}

    weight_bytes = 4 * (2 * c * hdim + hdim + c)

    # ---------------- fused single-block path (1 read + 1 write of x) -------
    # Estimate: double-buffered in/out blocks + transient f32 cast in the sum.
    fused_bytes = n * c * (4 * itemsize + 4) + weight_bytes
    if not force_tiled and fused_bytes <= vmem_budget:
        kernel = functools.partial(_se_fused_kernel, inv_n=inv_n,
                                   compute_dtype=compute_dtype)
        return pl.pallas_call(
            kernel,
            out_shape=jax.ShapeDtypeStruct((n, c), x.dtype),
            grid=(1,),
            in_specs=[
                pl.BlockSpec((n, c), lambda i: (0, 0)),
                pl.BlockSpec((c, hdim), lambda i: (0, 0)),
                pl.BlockSpec((1, hdim), lambda i: (0, 0)),
                pl.BlockSpec((hdim, c), lambda i: (0, 0)),
                pl.BlockSpec((1, c), lambda i: (0, 0)),
            ],
            out_specs=pl.BlockSpec((n, c), lambda i: (0, 0)),
            compiler_params=pltpu.CompilerParams(
                dimension_semantics=("arbitrary",), **vmem_params),
            input_output_aliases=io_alias,
        )(x, w1t, b1r, w2t, b2r)

    # ---------------- tiled path: no padding, ragged tail masked in-kernel --
    sublane = _sublane_multiple(x.dtype)
    tile_budget = min(vmem_budget // 3, 16 * 1024 * 1024)
    tile_n = _pick_tile_n(n, c, itemsize, sublane, tile_budget)
    if max_tile_n is not None:
        tile_n = max(sublane, min(tile_n, (max_tile_n // sublane) * sublane))

    num_tiles = pl.cdiv(n, tile_n)
    tiles_per_half = pl.cdiv(num_tiles, 2)          # leading axis = 2 halves
    has_phantom = (2 * tiles_per_half != num_tiles)
    needs_mask = (n % tile_n != 0) or has_phantom

    def x_sum_index_map(j, k):
        t = j * tiles_per_half + k
        # Clamp the (at most one) phantom tile; its rows are masked in-kernel.
        return (jnp.minimum(t, num_tiles - 1), 0)

    # Pass 1: per-half (8, C) f32 partial sums; halves core-parallel on v7x.
    partial = pl.pallas_call(
        functools.partial(_se_partial_sum_kernel, n_rows=n, tile_n=tile_n,
                          tiles_per_half=tiles_per_half, needs_mask=needs_mask),
        out_shape=jax.ShapeDtypeStruct((2 * 8, c), jnp.float32),
        grid=(2, tiles_per_half),
        in_specs=[pl.BlockSpec((tile_n, c), x_sum_index_map)],
        out_specs=pl.BlockSpec((8, c), lambda j, k: (j, 0)),
        compiler_params=pltpu.CompilerParams(
            dimension_semantics=("parallel", "arbitrary"), **vmem_params),
    )(x)

    # Pass 1b: tiny finalize (cross-sublane reduce + FCs + sigmoid), (1, C).
    se = pl.pallas_call(
        functools.partial(_se_finalize_kernel, inv_n=inv_n),
        out_shape=jax.ShapeDtypeStruct((1, c), jnp.float32),
        grid=(1,),
        in_specs=[
            pl.BlockSpec((2 * 8, c), lambda i: (0, 0)),
            pl.BlockSpec((c, hdim), lambda i: (0, 0)),
            pl.BlockSpec((1, hdim), lambda i: (0, 0)),
            pl.BlockSpec((hdim, c), lambda i: (0, 0)),
            pl.BlockSpec((1, c), lambda i: (0, 0)),
        ],
        out_specs=pl.BlockSpec((1, c), lambda i: (0, 0)),
        compiler_params=pltpu.CompilerParams(
            dimension_semantics=("arbitrary",), **vmem_params),
    )(partial, w1t, b1r, w2t, b2r)

    # Pass 2: out = x * se; partial tail block is clipped by masked writes.
    out = pl.pallas_call(
        functools.partial(_se_scale_kernel, compute_dtype=compute_dtype),
        out_shape=jax.ShapeDtypeStruct((n, c), x.dtype),
        grid=(num_tiles,),
        in_specs=[
            pl.BlockSpec((tile_n, c), lambda i: (i, 0)),
            pl.BlockSpec((1, c), lambda i: (0, 0)),
        ],
        out_specs=pl.BlockSpec((tile_n, c), lambda i: (i, 0)),
        compiler_params=pltpu.CompilerParams(
            dimension_semantics=("parallel",), **vmem_params),
        input_output_aliases=io_alias,
    )(x, se)
    return out


# ---------------------------------------------------------------------------
# Pure-JAX reference + test
# ---------------------------------------------------------------------------
def _se_reference(x, w1, b1, w2, b2):
    xf = x.astype(jnp.float32)
    mean = jnp.mean(xf, axis=0, keepdims=True)
    hid = jnp.maximum(mean @ w1.astype(jnp.float32).T + b1.astype(jnp.float32), 0.0)
    se = jax.nn.sigmoid(hid @ w2.astype(jnp.float32).T + b2.astype(jnp.float32))
    return (xf * se).astype(x.dtype)


if __name__ == "__main__":
    key = jax.random.PRNGKey(0)
    k1, k2, k3, k4, k5 = jax.random.split(key, 5)

    channel, reduction, n_rows = 256, 16, 64
    hidden = channel // reduction

    x = jax.random.normal(k1, (n_rows, channel), jnp.float32)
    w1 = jax.random.normal(k2, (hidden, channel), jnp.float32) * 0.05
    b1 = jax.random.normal(k3, (hidden,), jnp.float32) * 0.05
    w2 = jax.random.normal(k4, (channel, hidden), jnp.float32) * 0.05
    b2 = jax.random.normal(k5, (channel,), jnp.float32) * 0.05

    ref = _se_reference(x, w1, b1, w2, b2)

    # 1) fused single-block path (default for small / medium x)
    out_fused = jax.block_until_ready(squeeze_excitation(x, w1, b1, w2, b2))
    # 2) tiled path, tile divides N, even tile count (no masking)
    out_tiled = jax.block_until_ready(
        squeeze_excitation(x, w1, b1, w2, b2, force_tiled=True, max_tile_n=16))
    # 3) tiled path exercising the ragged-tail mask + phantom-tile clamp
    out_ragged = jax.block_until_ready(
        squeeze_excitation(x, w1, b1, w2, b2, force_tiled=True, max_tile_n=24))
    # 4) tiled path with a single tile per half (odd tile count -> phantom)
    out_single = jax.block_until_ready(
        squeeze_excitation(x, w1, b1, w2, b2, force_tiled=True))

    checks = (("fused", out_fused), ("tiled", out_tiled),
              ("ragged", out_ragged), ("single", out_single))
    for name, out in checks:
        assert out.shape == x.shape, (name, out.shape)
        err = float(jnp.max(jnp.abs(out.astype(jnp.float32) - ref.astype(jnp.float32))))
        assert err < 1e-4, (name, err)

    print("KERNEL_OK")
</pallas_src>

<mosaic_0001>
module attributes {stable_mosaic.version = 11 : i64} {
  func.func @_se_fused_kernel(%arg0: i32, %arg1: memref<64x256xf32, #tpu.memory_space<vmem>>, %arg2: memref<256x16xf32, #tpu.memory_space<vmem>>, %arg3: memref<1x16xf32, #tpu.memory_space<vmem>>, %arg4: memref<16x256xf32, #tpu.memory_space<vmem>>, %arg5: memref<1x256xf32, #tpu.memory_space<vmem>>, %arg6: memref<64x256xf32, #tpu.memory_space<vmem>>) attributes {dimension_semantics = [#tpu.dimension_semantics<arbitrary>], iteration_bounds = array<i64: 1>, scalar_prefetch = 0 : i64, scratch_operands = 0 : i64, tpu.core_type = #tpu.core_type<tc>, window_params = [{pipeline_mode = #tpu.pipeline_mode<synchronous>, transform_indices = @transform_0, window_bounds = array<i64: 64, 256>}, {pipeline_mode = #tpu.pipeline_mode<synchronous>, transform_indices = @transform_1, window_bounds = array<i64: 256, 16>}, {pipeline_mode = #tpu.pipeline_mode<synchronous>, transform_indices = @transform_2, window_bounds = array<i64: 1, 16>}, {pipeline_mode = #tpu.pipeline_mode<synchronous>, transform_indices = @transform_3, window_bounds = array<i64: 16, 256>}, {pipeline_mode = #tpu.pipeline_mode<synchronous>, transform_indices = @transform_4, window_bounds = array<i64: 1, 256>}, {pipeline_mode = #tpu.pipeline_mode<synchronous>, transform_indices = @transform_5, window_bounds = array<i64: 64, 256>}]} {
    %c0 = arith.constant 0 : index
    %c0_0 = arith.constant 0 : index
    %0 = vector.load %arg1[%c0, %c0_0] : memref<64x256xf32, #tpu.memory_space<vmem>>, vector<64x256xf32>
    %cst = arith.constant dense<0.000000e+00> : vector<256xf32>
    %1 = vector.multi_reduction <add>, %0, %cst [0] : vector<64x256xf32> to vector<256xf32>
    %2 = vector.shape_cast %1 : vector<256xf32> to vector<1x256xf32>
    %cst_1 = arith.constant 1.562500e-02 : f32
    %3 = vector.broadcast %cst_1 : f32 to vector<1x256xf32>
    %4 = arith.mulf %2, %3 : vector<1x256xf32>
    %c0_2 = arith.constant 0 : index
    %c0_3 = arith.constant 0 : index
    %5 = vector.load %arg2[%c0_2, %c0_3] : memref<256x16xf32, #tpu.memory_space<vmem>>, vector<256x16xf32>
    %cst_4 = arith.constant dense<0.000000e+00> : vector<1x16xf32>
    %6 = tpu.matmul %4, %5, %cst_4 {dimension_numbers = #tpu.dot_dimension_numbers<[1], [0], [0], [1], [0, 0, 1, 1], [], []>} : vector<1x256xf32>, vector<256x16xf32>, vector<1x16xf32> -> vector<1x16xf32>
    %c0_5 = arith.constant 0 : index
    %c0_6 = arith.constant 0 : index
    %7 = vector.load %arg3[%c0_5, %c0_6] : memref<1x16xf32, #tpu.memory_space<vmem>>, vector<1x16xf32>
    %8 = arith.addf %6, %7 : vector<1x16xf32>
    %cst_7 = arith.constant 0.000000e+00 : f32
    %9 = vector.broadcast %cst_7 : f32 to vector<1x16xf32>
    %10 = arith.maximumf %8, %9 : vector<1x16xf32>
    %c0_8 = arith.constant 0 : index
    %c0_9 = arith.constant 0 : index
    %11 = vector.load %arg4[%c0_8, %c0_9] : memref<16x256xf32, #tpu.memory_space<vmem>>, vector<16x256xf32>
    %cst_10 = arith.constant dense<0.000000e+00> : vector<1x256xf32>
    %12 = tpu.matmul %10, %11, %cst_10 {dimension_numbers = #tpu.dot_dimension_numbers<[1], [0], [0], [1], [0, 0, 1, 1], [], []>} : vector<1x16xf32>, vector<16x256xf32>, vector<1x256xf32> -> vector<1x256xf32>
    %c0_11 = arith.constant 0 : index
    %c0_12 = arith.constant 0 : index
    %13 = vector.load %arg5[%c0_11, %c0_12] : memref<1x256xf32, #tpu.memory_space<vmem>>, vector<1x256xf32>
    %14 = arith.addf %12, %13 : vector<1x256xf32>
    %15 = arith.negf %14 : vector<1x256xf32>
    %16 = math.exp %15 : vector<1x256xf32>
    %cst_13 = arith.constant 1.000000e+00 : f32
    %17 = vector.broadcast %cst_13 : f32 to vector<1x256xf32>
    %18 = arith.addf %17, %16 : vector<1x256xf32>
    %19 = arith.divf %17, %18 : vector<1x256xf32>
    %c0_14 = arith.constant 0 : index
    %c0_15 = arith.constant 0 : index
    %20 = vector.load %arg1[%c0_14, %c0_15] : memref<64x256xf32, #tpu.memory_space<vmem>>, vector<64x256xf32>
    %21 = vector.broadcast %19 : vector<1x256xf32> to vector<64x256xf32>
    %22 = arith.mulf %20, %21 : vector<64x256xf32>
    %c0_16 = arith.constant 0 : index
    %c0_17 = arith.constant 0 : index
    %23 = vector.load %arg6[%c0_16, %c0_17] : memref<64x256xf32, #tpu.memory_space<vmem>>, vector<64x256xf32>
    tpu.vector_store %arg6[%c0_16, %c0_17], %22 {strides = array<i32>} : memref<64x256xf32, #tpu.memory_space<vmem>>, vector<64x256xf32>,
    return
  }
  func.func @transform_0(%arg0: i32) -> (i32, i32) {
    %c0_i32 = arith.constant 0 : i32
    %c0_i32_0 = arith.constant 0 : i32
    %c0_i32_1 = arith.constant 0 : i32
    return %c0_i32, %c0_i32_0 : i32, i32
  }
  func.func @transform_1(%arg0: i32) -> (i32, i32) {
    %c0_i32 = arith.constant 0 : i32
    %c0_i32_0 = arith.constant 0 : i32
    %c0_i32_1 = arith.constant 0 : i32
    return %c0_i32, %c0_i32_0 : i32, i32
  }
  func.func @transform_2(%arg0: i32) -> (i32, i32) {
    %c0_i32 = arith.constant 0 : i32
    %c0_i32_0 = arith.constant 0 : i32
    %c0_i32_1 = arith.constant 0 : i32
    return %c0_i32, %c0_i32_0 : i32, i32
  }
  func.func @transform_3(%arg0: i32) -> (i32, i32) {
    %c0_i32 = arith.constant 0 : i32
    %c0_i32_0 = arith.constant 0 : i32
    %c0_i32_1 = arith.constant 0 : i32
    return %c0_i32, %c0_i32_0 : i32, i32
  }
  func.func @transform_4(%arg0: i32) -> (i32, i32) {
    %c0_i32 = arith.constant 0 : i32
    %c0_i32_0 = arith.constant 0 : i32
    %c0_i32_1 = arith.constant 0 : i32
    return %c0_i32, %c0_i32_0 : i32, i32
  }
  func.func @transform_5(%arg0: i32) -> (i32, i32) {
    %c0_i32 = arith.constant 0 : i32
    %c0_i32_0 = arith.constant 0 : i32
    %c0_i32_1 = arith.constant 0 : i32
    return %c0_i32, %c0_i32_0 : i32, i32
  }
}

</mosaic_0001>

<llo_original>
// kernel: tpu_custom_call.1
$region0: #{tpu_custom_call.1}
  #allocation0 [shape = 'u32[]', space=smem, size = 0x4, offset = 0x4, fixed_abs, tag = 'smem constant byte address 0x4 - core index']
  #allocation1 [shape = 'u32[144,128]{1,0:T(1,128)}', space=vmem, size = 0x12000, scoped, tag = 'internal scratch']
  %s0 = inlined_call_operand.vmem [shape: f32[64,256], index: 0, kind: input, shape index: {}]
  %s1 = inlined_call_operand.vmem [shape: f32[256,16], index: 1, kind: input, shape index: {}]
  %s2 = inlined_call_operand.vmem [shape: f32[1,16], index: 2, kind: input, shape index: {}]
  %s3 = inlined_call_operand.vmem [shape: f32[16,256], index: 3, kind: input, shape index: {}]
  %s4 = inlined_call_operand.vmem [shape: f32[1,256], index: 4, kind: input, shape index: {}]
  %s5 = inlined_call_operand.hbm [shape: f32[64,256], index: 5, kind: output, shape index: {}]
  %s6 = sld [smem:[#allocation0]]
  $region30: #{tpu_custom_call.1} parent=0
    _
  %s8 = ssub.s32 1, %s6
  %s9 = scalar_select 0, %s8, %s6
  $region1: #{tpu_custom_call.1} parent=0
    #allocation2 [shape = 'u8[65536]{0}', space=vmem, size = 0x10000, scoped, tag = 'output window, operand 0, single buffered']
    #allocation3 [shape = 's32[1]{0}', space=sflag, size = 0x4, scoped, tag = 'scoped memory for tpu_custom_call.1']
    %10 = vsyncpa [#allocation3], 0
    // Predicated region
    $region2: #{tpu_custom_call.1} parent=1 // pred_check
      _
    $region3: #{tpu_custom_call.1} parent=1 // pred_check_branch
      %12 = sbr.rel (0) target = $region5
    $region4: #{tpu_custom_call.1} parent=1 // pred_region
      _
    $region5: #{tpu_custom_call.1} parent=1 // pred_fallthru
      _
    // Predicated region
    $region6: #{tpu_custom_call.1} parent=1 // pred_check
      _
    $region7: #{tpu_custom_call.1} parent=1 // pred_check_branch
      %14 = sbr.rel (0) target = $region9
    $region8: #{tpu_custom_call.1} parent=1 // pred_region
      _
    $region9: #{tpu_custom_call.1} parent=1 // pred_fallthru
      _
    // Predicated region
    $region10: #{tpu_custom_call.1} parent=1 // pred_check
      _
    $region11: #{tpu_custom_call.1} parent=1 // pred_check_branch
      %16 = sbr.rel (0) target = $region13
    $region12: #{tpu_custom_call.1} parent=1 // pred_region
      _
    $region13: #{tpu_custom_call.1} parent=1 // pred_fallthru
      _
    // Predicated region
    $region14: #{tpu_custom_call.1} parent=1 // pred_check
      _
    $region15: #{tpu_custom_call.1} parent=1 // pred_check_branch
      %18 = sbr.rel (0) target = $region17
    $region16: #{tpu_custom_call.1} parent=1 // pred_region
      _
    $region17: #{tpu_custom_call.1} parent=1 // pred_fallthru
      _
    // Predicated region
    $region18: #{tpu_custom_call.1} parent=1 // pred_check
      _
    $region19: #{tpu_custom_call.1} parent=1 // pred_check_branch
      %20 = sbr.rel (0) target = $region21
    $region20: #{tpu_custom_call.1} parent=1 // pred_region
      _
    $region21: #{tpu_custom_call.1} parent=1 // pred_fallthru
      _
    %v21 = vld [vmem:[%s0] sm:$0xff]
    %v22 = vld [vmem:[%s0 + $0x8] sm:$0xff]
    %v23 = vld [vmem:[%s0 + $0x10] sm:$0xff]
    %v24 = vld [vmem:[%s0 + $0x18] sm:$0xff]
    %v25 = vld [vmem:[%s0 + $0x20] sm:$0xff]
    %v26 = vld [vmem:[%s0 + $0x28] sm:$0xff]
    %v27 = vld [vmem:[%s0 + $0x30] sm:$0xff]
    %v28 = vld [vmem:[%s0 + $0x38] sm:$0xff]
    %v29 = vld [vmem:[%s0 + $0x40] sm:$0xff]
    %v30 = vld [vmem:[%s0 + $0x48] sm:$0xff]
    %v31 = vld [vmem:[%s0 + $0x50] sm:$0xff]
    %v32 = vld [vmem:[%s0 + $0x58] sm:$0xff]
    %v33 = vld [vmem:[%s0 + $0x60] sm:$0xff]
    %v34 = vld [vmem:[%s0 + $0x68] sm:$0xff]
    %v35 = vld [vmem:[%s0 + $0x70] sm:$0xff]
    %v36 = vld [vmem:[%s0 + $0x78] sm:$0xff]
    %v37 = vadd.f32 %v21, %v23
    %v38 = vadd.f32 %v37, %v25
    %v39 = vadd.f32 %v38, %v27
    %v40 = vadd.f32 %v39, %v29
    %v41 = vadd.f32 %v40, %v31
    %v42 = vadd.f32 %v41, %v33
    %v43 = vadd.f32 %v42, %v35
    %v44 = vrot.slane %v43, 4
    %v45 = vadd.f32 %v43, %v44
    %v46 = vrot.slane %v45, 2
    %v47 = vadd.f32 %v45, %v46
    %v48 = vrot.slane %v47, 1
    %v49 = vadd.f32 %v47, %v48
    %v50 = vadd.f32 %v22, %v24
    %v51 = vadd.f32 %v50, %v26
    %v52 = vadd.f32 %v51, %v28
    %v53 = vadd.f32 %v52, %v30
    %v54 = vadd.f32 %v53, %v32
    %v55 = vadd.f32 %v54, %v34
    %v56 = vadd.f32 %v55, %v36
    %v57 = vrot.slane %v56, 4
    %v58 = vadd.f32 %v56, %v57
    %v59 = vrot.slane %v58, 2
    %v60 = vadd.f32 %v58, %v59
    %v61 = vrot.slane %v60, 1
    %v62 = vadd.f32 %v60, %v61
    %v63 = vmul.f32 %v49, 0.015625
    %v64 = vmul.f32 %v62, 0.015625
    %v65 = vld [vmem:[%s1] sm:$0xff]
    %v66 = vld [vmem:[%s1 + $0x8] sm:$0xff]
    %v67 = vld [vmem:[%s1 + $0x10] sm:$0xff]
    %v68 = vld [vmem:[%s1 + $0x18] sm:$0xff]
    %v69 = vld [vmem:[%s1 + $0x20] sm:$0xff]
    %v70 = vld [vmem:[%s1 + $0x28] sm:$0xff]
    %v71 = vld [vmem:[%s1 + $0x30] sm:$0xff]
    %v72 = vld [vmem:[%s1 + $0x38] sm:$0xff]
    %v73 = vld [vmem:[%s1 + $0x40] sm:$0xff]
    %v74 = vld [vmem:[%s1 + $0x48] sm:$0xff]
    %v75 = vld [vmem:[%s1 + $0x50] sm:$0xff]
    %v76 = vld [vmem:[%s1 + $0x58] sm:$0xff]
    %v77 = vld [vmem:[%s1 + $0x60] sm:$0xff]
    %v78 = vld [vmem:[%s1 + $0x68] sm:$0xff]
    %v79 = vld [vmem:[%s1 + $0x70] sm:$0xff]
    %v80 = vld [vmem:[%s1 + $0x78] sm:$0xff]
    %v81 = vld [vmem:[%s1 + $0x80] sm:$0xff]
    %v82 = vld [vmem:[%s1 + $0x88] sm:$0xff]
    %v83 = vld [vmem:[%s1 + $0x90] sm:$0xff]
    %v84 = vld [vmem:[%s1 + $0x98] sm:$0xff]
    %v85 = vld [vmem:[%s1 + $0xa0] sm:$0xff]
    %v86 = vld [vmem:[%s1 + $0xa8] sm:$0xff]
    %v87 = vld [vmem:[%s1 + $0xb0] sm:$0xff]
    %v88 = vld [vmem:[%s1 + $0xb8] sm:$0xff]
    %v89 = vld [vmem:[%s1 + $0xc0] sm:$0xff]
    %v90 = vld [vmem:[%s1 + $0xc8] sm:$0xff]
    %v91 = vld [vmem:[%s1 + $0xd0] sm:$0xff]
    %v92 = vld [vmem:[%s1 + $0xd8] sm:$0xff]
    %v93 = vld [vmem:[%s1 + $0xe0] sm:$0xff]
    %v94 = vld [vmem:[%s1 + $0xe8] sm:$0xff]
    %v95 = vld [vmem:[%s1 + $0xf0] sm:$0xff]
    %v96 = vld [vmem:[%s1 + $0xf8] sm:$0xff]
    %v97 = vld [vmem:[%s2] sm:$0x1]
    %98 = vmatprep.subr.mxu0 0.0
    %99 = vmatpush1.msra.mxu0 %v65
    %100 = vmatprep.subr.mxu0 0.0
    %101 = vmatpush1.msra.mxu0 %v66
    %102 = vmatprep.subr.mxu0 0.0
    %103 = vmatpush1.msra.mxu0 %v67
    %104 = vmatprep.subr.mxu0 0.0
    %105 = vmatpush1.msra.mxu0 %v68
    %106 = vmatprep.subr.mxu0 0.0
    %107 = vmatpush1.msra.mxu0 %v69
    %108 = vmatprep.subr.mxu0 0.0
    %109 = vmatpush1.msra.mxu0 %v70
    %110 = vmatprep.subr.mxu0 0.0
    %111 = vmatpush1.msra.mxu0 %v71
    %112 = vmatprep.subr.mxu0 0.0
    %113 = vmatpush1.msra.mxu0 %v72
    %114 = vmatprep.subr.mxu0 0.0
    %115 = vmatpush1.msra.mxu0 %v73
    %116 = vmatprep.subr.mxu0 0.0
    %117 = vmatpush1.msra.mxu0 %v74
    %118 = vmatprep.subr.mxu0 0.0
    %119 = vmatpush1.msra.mxu0 %v75
    %120 = vmatprep.subr.mxu0 0.0
    %121 = vmatpush1.msra.mxu0 %v76
    %122 = vmatprep.subr.mxu0 0.0
    %123 = vmatpush1.msra.mxu0 %v77
    %124 = vmatprep.subr.mxu0 0.0
    %125 = vmatpush1.msra.mxu0 %v78
    %126 = vmatprep.subr.mxu0 0.0
    %127 = vmatpush1.msra.mxu0 %v79
    %128 = vmatprep.subr.mxu0 0.0
    %129 = vmatpush1.msra.mxu0 %v80
    %130 = vmatprep.subr.mxu0 0.0
    %131 = vmatpush1.msra.mxu0 %v81
    %132 = vmatprep.subr.mxu0 0.0
    %133 = vmatpush1.msra.mxu0 %v82
    %134 = vmatprep.subr.mxu0 0.0
    %135 = vmatpush1.msra.mxu0 %v83
    %136 = vmatprep.subr.mxu0 0.0
    %137 = vmatpush1.msra.mxu0 %v84
    %138 = vmatprep.subr.mxu0 0.0
    %139 = vmatpush1.msra.mxu0 %v85
    %140 = vmatprep.subr.mxu0 0.0
    %141 = vmatpush1.msra.mxu0 %v86
    %142 = vmatprep.subr.mxu0 0.0
    %143 = vmatpush1.msra.mxu0 %v87
    %144 = vmatprep.subr.mxu0 0.0
    %145 = vmatpush1.msra.mxu0 %v88
    %146 = vmatprep.subr.mxu0 0.0
    %147 = vmatpush1.msra.mxu0 %v89
    %148 = vmatprep.subr.mxu0 0.0
    %149 = vmatpush1.msra.mxu0 %v90
    %150 = vmatprep.subr.mxu0 0.0
    %151 = vmatpush1.msra.mxu0 %v91
    %152 = vmatprep.subr.mxu0 0.0
    %153 = vmatpush1.msra.mxu0 %v92
    %154 = vmatprep.subr.mxu0 0.0
    %155 = vmatpush1.msra.mxu0 %v93
    %156 = vmatprep.subr.mxu0 0.0
    %157 = vmatpush1.msra.mxu0 %v94
    %158 = vmatprep.subr.mxu0 0.0
    %159 = vmatpush1.msra.mxu0 %v95
    %160 = vmatprep.subr.mxu0 0.0
    %161 = vmatpush1.msra.mxu0 %v96
    %162 = vmatprep.mubr.f32.mxu0 %v64
    %163 = vmatmul.mubr.f32.gmra.mrb[0].mxu0 %v63
    %v164 = vpop.f32.mrb[0].mxu0
    %v165 = vadd.f32 %v97, %v164
    %v166 = vpop.f32.mrb[0].mxu0
    %167 = vdwg.mxu0
    %v168 = vmax.f32 %v165, 0.0
    %v169 = vld [vmem:[%s3] sm:$0xff]
    %v170 = vld [vmem:[%s3 + $0x8] sm:$0xff]
    %v171 = vld [vmem:[%s3 + $0x10] sm:$0xff]
    %v172 = vld [vmem:[%s3 + $0x18] sm:$0xff]
    %v173 = vld [vmem:[%s4] sm:$0x3]
    %v175 = vlaneseq
    %v176 = vshrl.u32 %v175, 7
    %v177 = vsub.s32 0, %v176
    %v178 = vrot.slane %v173, %v177
    %v179 = vlaneseq
    %v180 = vshrl.u32 %v179, 7
    %v181 = vsub.s32 1, %v180
    %v182 = vrot.slane %v173, %v181
    %vm185 = vcmask 130048
    %v187 = vsel %vm185, %v168, 0
    %189 = vmatprep.subr.mxu0 %v170
    %190 = vmatpush1.msra.mxu0 %v169
    %191 = vmatprep.subr.mxu0 %v172
    %192 = vmatpush1.msra.mxu0 %v171
    %193 = vmatprep.subr.mxu0 0.0
    %194 = vmatpush1.msra.mxu0 0.0
    %195 = vmatprep.subr.mxu0 0.0
    %196 = vmatpush1.msra.mxu0 0.0
    %197 = vmatprep.subr.mxu0 0.0
    %198 = vmatpush1.msra.mxu0 0.0
    %199 = vmatprep.subr.mxu0 0.0
    %200 = vmatpush1.msra.mxu0 0.0
    %201 = vmatprep.subr.mxu0 0.0
    %202 = vmatpush1.msra.mxu0 0.0
    %203 = vmatprep.subr.mxu0 0.0
    %204 = vmatpush1.msra.mxu0 0.0
    %205 = vmatprep.subr.mxu0 0.0
    %206 = vmatpush1.msra.mxu0 0.0
    %207 = vmatprep.subr.mxu0 0.0
    %208 = vmatpush1.msra.mxu0 0.0
    %209 = vmatprep.subr.mxu0 0.0
    %210 = vmatpush1.msra.mxu0 0.0
    %211 = vmatprep.subr.mxu0 0.0
    %212 = vmatpush1.msra.mxu0 0.0
    %213 = vmatprep.subr.mxu0 0.0
    %214 = vmatpush1.msra.mxu0 0.0
    %215 = vmatprep.subr.mxu0 0.0
    %216 = vmatpush1.msra.mxu0 0.0
    %217 = vmatprep.subr.mxu0 0.0
    %218 = vmatpush1.msra.mxu0 0.0
    %219 = vmatprep.subr.mxu0 0.0
    %220 = vmatpush1.msra.mxu0 0.0
    %221 = vmatprep.subr.mxu0 0.0
    %222 = vmatpush1.msra.mxu0 0.0
    %223 = vmatprep.subr.mxu0 0.0
    %224 = vmatpush1.msra.mxu0 0.0
    %225 = vmatprep.subr.mxu0 0.0
    %226 = vmatpush1.msra.mxu0 0.0
    %227 = vmatprep.subr.mxu0 0.0
    %228 = vmatpush1.msra.mxu0 0.0
    %229 = vmatprep.subr.mxu0 0.0
    %230 = vmatpush1.msra.mxu0 0.0
    %231 = vmatprep.subr.mxu0 0.0
    %232 = vmatpush1.msra.mxu0 0.0
    %233 = vmatprep.subr.mxu0 0.0
    %234 = vmatpush1.msra.mxu0 0.0
    %235 = vmatprep.subr.mxu0 0.0
    %236 = vmatpush1.msra.mxu0 0.0
    %237 = vmatprep.subr.mxu0 0.0
    %238 = vmatpush1.msra.mxu0 0.0
    %239 = vmatprep.subr.mxu0 0.0
    %240 = vmatpush1.msra.mxu0 0.0
    %241 = vmatprep.subr.mxu0 0.0
    %242 = vmatpush1.msra.mxu0 0.0
    %243 = vmatprep.subr.mxu0 0.0
    %244 = vmatpush1.msra.mxu0 0.0
    %245 = vmatprep.subr.mxu0 0.0
    %246 = vmatpush1.msra.mxu0 0.0
    %247 = vmatprep.subr.mxu0 0.0
    %248 = vmatpush1.msra.mxu0 0.0
    %249 = vmatprep.subr.mxu0 0.0
    %250 = vmatpush1.msra.mxu0 0.0
    %251 = vmatprep.subr.mxu0 0.0
    %252 = vmatpush1.msra.mxu0 0.0
    %253 = vmatprep.mubr.f32.mxu0 0.0
    %254 = vmatmul.mubr.f32.gmra.mrb[0].mxu0 %v187
    %v255 = vpop.f32.mrb[0].mxu0
    %v256 = vadd.f32 %v178, %v255
    %v257 = vpop.f32.mrb[0].mxu0
    %v258 = vadd.f32 %v182, %v257
    %259 = vdwg.mxu0
    %v260 = vxor.u32 %v256, 2147483648
    %v261 = vxor.u32 %v258, 2147483648
    %v262 = vmul.f32 %v260, 1.442695
    %v263 = vpow.pop %v262
    %v264 = vmul.f32 %v261, 1.442695
    %v265 = vpow.pop %v264
    %v266 = vadd.f32 %v263, 1.0
    %v267 = vadd.f32 %v265, 1.0
    %v268 = vrcp.pop %v266
    %v269 = vmul.f32 1.0, %v268
    %v270 = vrcp.pop %v267
    %v271 = vmul.f32 1.0, %v270
    %v272 = vlaneseq
    %v273 = vshrl.u32 %v272, 7
    %v274 = vsub.s32 0, %v273
    %v275 = vrot.slane %v269, %v274
    %v276 = vlaneseq
    %v277 = vshrl.u32 %v276, 7
    %v278 = vsub.s32 0, %v277
    %v279 = vrot.slane %v271, %v278
    %v280 = vmul.f32 %v21, %v275
    %v281 = vmul.f32 %v22, %v279
    %v282 = vmul.f32 %v23, %v275
    %v283 = vmul.f32 %v24, %v279
    %v284 = vmul.f32 %v25, %v275
    %v285 = vmul.f32 %v26, %v279
    %v286 = vmul.f32 %v27, %v275
    %v287 = vmul.f32 %v28, %v279
    %v288 = vmul.f32 %v29, %v275
    %v289 = vmul.f32 %v30, %v279
    %v290 = vmul.f32 %v31, %v275
    %v291 = vmul.f32 %v32, %v279
    %v292 = vmul.f32 %v33, %v275
    %v293 = vmul.f32 %v34, %v279
    %v294 = vmul.f32 %v35, %v275
    %v295 = vmul.f32 %v36, %v279
    %296 = vst [vmem:[#allocation2] sm:$0xff] %v280
    %297 = vst [vmem:[#allocation2 + $0x8] sm:$0xff] %v281
    %298 = vst [vmem:[#allocation2 + $0x10] sm:$0xff] %v282
    %299 = vst [vmem:[#allocation2 + $0x18] sm:$0xff] %v283
    %300 = vst [vmem:[#allocation2 + $0x20] sm:$0xff] %v284
    %301 = vst [vmem:[#allocation2 + $0x28] sm:$0xff] %v285
    %302 = vst [vmem:[#allocation2 + $0x30] sm:$0xff] %v286
    %303 = vst [vmem:[#allocation2 + $0x38] sm:$0xff] %v287
    %304 = vst [vmem:[#allocation2 + $0x40] sm:$0xff] %v288
    %305 = vst [vmem:[#allocation2 + $0x48] sm:$0xff] %v289
    %306 = vst [vmem:[#allocation2 + $0x50] sm:$0xff] %v290
    %307 = vst [vmem:[#allocation2 + $0x58] sm:$0xff] %v291
    %308 = vst [vmem:[#allocation2 + $0x60] sm:$0xff] %v292
    %309 = vst [vmem:[#allocation2 + $0x68] sm:$0xff] %v293
    %310 = vst [vmem:[#allocation2 + $0x70] sm:$0xff] %v294
    %311 = vst [vmem:[#allocation2 + $0x78] sm:$0xff] %v295
    // Predicated region
    $region22: #{tpu_custom_call.1} parent=1 // pred_check
      _
    $region23: #{tpu_custom_call.1} parent=1 // pred_check_branch
      %313 = sbr.rel (0) target = $region25
    $region24: #{tpu_custom_call.1} parent=1 // pred_region
      %s315 = ssub.s32 2048, 2048
      %316 = vsyncadd [#allocation3], %s315
      %s317 = sshll.u32 [#allocation2], 4
      %s318 = int_to_ptr.vmem [resolvable:$true] %s317
      %323 = dma.vmem_to_hbm [thread:$0]  %s318, 2048, %s5, [#allocation3], 256, 256, 16
    $region25: #{tpu_custom_call.1} parent=1 // pred_fallthru
      _
    // Predicated region
    $region26: #{tpu_custom_call.1} parent=1 // pred_check
      _
    $region27: #{tpu_custom_call.1} parent=1 // pred_check_branch
      %325 = sbr.rel (0) target = $region29
    $region28: #{tpu_custom_call.1} parent=1 // pred_region
      %326 = dma.done [#allocation3], 2048
    $region29: #{tpu_custom_call.1} parent=1 // pred_fallthru
      _
    %327 = vsyncpa [#allocation3], 1

</llo_original>
